<compile_context>
chip_gen: v5e
topology: v5e:2x2
jax: 0.10.0
libtpu: 0.0.40
codegen_flags: <defaults>
</compile_context>

<pallas_src>
import functools

import jax
import jax.numpy as jnp
from jax import lax
from jax.experimental import pallas as pl
from jax.experimental.pallas import tpu as pltpu


def _round_up(a: int, b: int) -> int:
    return (a + b - 1) // b * b


def _vmem_budget_bytes() -> int:
    """3/4 of physical VMEM if queryable, else a v7x-safe 48 MiB."""
    try:
        cap = getattr(pltpu.get_tpu_info(), "vmem_capacity_bytes", None)
        if cap:
            return int(cap) * 3 // 4
    except Exception:
        pass
    return 48 * 1024 * 1024


def _center_loss_kernel(x_ref, ct_ref, x2_ref, c2_ref, lab_ref, out_ref, *,
                        tb, tc, f32_matmul):
    j = pl.program_id(1)

    @pl.when(j == 0)
    def _init():
        out_ref[...] = jnp.zeros_like(out_ref)

    # x @ centers^T on the MXU; operands arrive already in their HBM dtype
    # (bf16 by default), norms arrive precomputed in f32 from the wrapper.
    if f32_matmul:
        xc = jnp.dot(x_ref[...], ct_ref[...],
                     preferred_element_type=jnp.float32,
                     precision=lax.Precision.HIGHEST)
    else:
        xc = jnp.dot(x_ref[...], ct_ref[...],
                     preferred_element_type=jnp.float32)

    distmat = x2_ref[...] + c2_ref[...] - 2.0 * xc           # (tb, tc) f32

    # Only the label column of each row survives the mask; every other entry
    # (including padded rows/cols) becomes exactly clamp(0) == 1e-12, whose
    # padding excess is subtracted analytically in the wrapper.
    col = j * tc + lax.broadcasted_iota(jnp.int32, (tb, tc), 1)
    dist = jnp.where(lab_ref[...] == col, distmat, 0.0)
    dist = jnp.clip(dist, 1e-12, 1e12)                       # clamp AFTER mask

    # vreg-shaped reduction: fold lane-aligned 128-wide chunks, then
    # sublane-aligned 8-row chunks (pure VPU vreg adds, no in-kernel
    # cross-lane reduce); final scalar reduce happens once in the wrapper.
    acc = dist[:, 0:128]
    for k in range(1, tc // 128):
        acc = acc + dist[:, k * 128:(k + 1) * 128]           # (tb, 128)
    acc8 = acc[0:8, :]
    for r in range(1, tb // 8):
        acc8 = acc8 + acc[r * 8:(r + 1) * 8, :]              # (8, 128)
    out_ref[...] += acc8


def center_loss(x, centers, labels, *, tb_max=512, tc_max=None,
                matmul_dtype=jnp.bfloat16):
    """x: (B, D), centers: (C, D), labels: (B,) int -> scalar f32 loss.

    matmul_dtype=jnp.bfloat16 (default): bf16 operand streams (mem-bound ~2x
    win).  Pass jnp.float32 for a full-precision cross term (precision=HIGHEST).
    """
    x = jnp.asarray(x, jnp.float32)
    centers = jnp.asarray(centers, jnp.float32)
    labels = jnp.asarray(labels, jnp.int32)
    B, D = x.shape
    C, Dc = centers.shape
    assert D == Dc, (D, Dc)

    ob = jnp.dtype(matmul_dtype).itemsize
    Dp = _round_up(D, 128)
    Cp_full = _round_up(C, 128)

    # ---- B tiling: multiple of 16 (bf16 sublane packing); force >= 2 tiles on
    #      the "parallel" axis whenever B allows (v7x dual TensorCore).
    tb = min(tb_max, _round_up(B, 16))
    if _round_up(B, tb) // tb < 2 and B > 16:
        tb = max(16, _round_up((B + 1) // 2, 16))

    # ---- C tiling: prefer one fully VMEM-resident centers^T slab (fetched
    #      once, reused by every B tile); otherwise stream lane-dense chunks.
    def vmem_est(tb_, tc_):
        in_bufs = 2 * (tb_ * Dp * ob      # x tile (double-buffered)
                       + Dp * tc_ * ob    # centers^T tile
                       + tb_ * 128 * 4    # ||x||^2 (lane-padded in VMEM)
                       + 8 * tc_ * 4      # ||c||^2 (sublane-padded)
                       + tb_ * 128 * 4)   # labels  (lane-padded)
        out_bufs = 2 * 8 * 128 * 4
        interm = 4 * tb_ * tc_ * 4        # xc / distmat / mask / dist
        return in_bufs + out_bufs + interm

    budget = _vmem_budget_bytes()
    tc = Cp_full if tc_max is None else min(Cp_full, _round_up(tc_max, 128))
    while vmem_est(tb, tc) > budget and tc > 128:
        tc = max(128, _round_up(tc // 2, 128))
    while vmem_est(tb, tc) > budget and tb > 16:
        tb = max(16, _round_up(tb // 2, 16))

    Bp = _round_up(B, tb)
    Cp = _round_up(C, tc)
    nb, nc = Bp // tb, Cp // tc

    # ---- wrapper-side precompute: f32 norms, operand-dtype streams, padding.
    #      (Zero padding does not perturb dot products; norms use unpadded f32.)
    x2 = jnp.sum(x * x, axis=1, keepdims=True)                                 # (B, 1)
    c2 = jnp.sum(centers * centers, axis=1)                                    # (C,)
    xp = jnp.pad(x, ((0, Bp - B), (0, Dp - D))).astype(matmul_dtype)           # (Bp, Dp)
    ctp = jnp.pad(centers, ((0, Cp - C), (0, Dp - D))).T.astype(matmul_dtype)  # (Dp, Cp)
    x2p = jnp.pad(x2, ((0, Bp - B), (0, 0)))                                   # (Bp, 1)
    c2p = jnp.pad(c2, (0, Cp - C)).reshape(1, Cp)                              # (1, Cp)
    labp = jnp.pad(labels, (0, Bp - B), constant_values=-1).reshape(Bp, 1)     # (Bp, 1)

    kernel = functools.partial(
        _center_loss_kernel, tb=tb, tc=tc,
        f32_matmul=(jnp.dtype(matmul_dtype) == jnp.dtype(jnp.float32)))

    vmem_limit = int(min(budget, max(2 * vmem_est(tb, tc), 32 * 1024 * 1024)))
    flops = 2 * Bp * Cp * Dp + 8 * Bp * Cp
    bytes_accessed = (ob * Bp * Dp
                      + ob * Dp * Cp * (1 if nc == 1 else nb)
                      + 4 * (2 * Bp + Cp)
                      + 4 * nb * 8 * 128)

    out = pl.pallas_call(
        kernel,
        out_shape=jax.ShapeDtypeStruct((nb * 8, 128), jnp.float32),
        grid_spec=pltpu.PrefetchScalarGridSpec(
            num_scalar_prefetch=0,
            grid=(nb, nc),
            in_specs=[
                pl.BlockSpec((tb, Dp), lambda i, j: (i, 0)),   # x tile
                pl.BlockSpec((Dp, tc), lambda i, j: (0, j)),   # centers^T tile
                pl.BlockSpec((tb, 1), lambda i, j: (i, 0)),    # ||x||^2 tile
                pl.BlockSpec((1, tc), lambda i, j: (0, j)),    # ||c||^2 tile
                pl.BlockSpec((tb, 1), lambda i, j: (i, 0)),    # labels tile
            ],
            out_specs=pl.BlockSpec((8, 128), lambda i, j: (i, 0)),
        ),
        compiler_params=pltpu.CompilerParams(
            dimension_semantics=("parallel", "arbitrary"),
            vmem_limit_bytes=vmem_limit,
        ),
        cost_estimate=pl.CostEstimate(
            flops=flops, transcendentals=0, bytes_accessed=bytes_accessed),
    )(xp, ctp, x2p, c2p, labp)

    # Padded rows/columns were not masked in-kernel; each contributed exactly
    # clamp(0) == 1e-12 — a compile-time constant we subtract here.  The single
    # cross-lane reduce of the per-tile (8, 128) partials also happens here.
    spurious = (B * (Cp - C) + (Bp - B) * Cp) * 1e-12
    total = jnp.sum(out)
    return (total - jnp.float32(spurious)) / jnp.float32(B)


def _center_loss_ref(x, centers, labels):
    # Pure-JAX reference mirroring the PyTorch forward exactly.
    B = x.shape[0]
    C = centers.shape[0]
    distmat = (jnp.sum(x * x, axis=1, keepdims=True)
               + jnp.sum(centers * centers, axis=1)[None, :]
               - 2.0 * jnp.dot(x, centers.T, precision=lax.Precision.HIGHEST))
    mask = labels[:, None] == jnp.arange(C)[None, :]
    dist = jnp.where(mask, distmat, 0.0)
    return jnp.clip(dist, 1e-12, 1e12).sum() / B


if __name__ == "__main__":
    # Small shapes consistent with the module (defaults C=200, D=768; D scaled
    # down).  B/C/D deliberately not multiples of 16/128 to exercise padding.
    B, C, D = 24, 200, 96
    key = jax.random.PRNGKey(0)
    kx, kc, kl = jax.random.split(key, 3)

    x = jax.random.normal(kx, (B, D), dtype=jnp.float32)
    centers = jax.random.normal(kc, (C, D), dtype=jnp.float32)
    labels = jax.random.randint(kl, (B,), 0, C, dtype=jnp.int32)

    ref = _center_loss_ref(x, centers, labels)

    # f32 path, forced multi-tile grid on both axes: exercises the streamed-C
    # accumulator (pl.when init), B/C padding and nb >= 2 on the parallel axis.
    loss_f32 = jax.block_until_ready(
        center_loss(x, centers, labels, tb_max=16, tc_max=128,
                    matmul_dtype=jnp.float32))
    assert jnp.allclose(loss_f32, ref, rtol=2e-3, atol=2e-3), (loss_f32, ref)

    # f32 path, VMEM-resident centers^T (single C tile, fetched once).
    loss_res = jax.block_until_ready(
        center_loss(x, centers, labels, matmul_dtype=jnp.float32))
    assert jnp.allclose(loss_res, ref, rtol=2e-3, atol=2e-3), (loss_res, ref)

    # Default fast path: bf16 operand streams + precomputed f32 norms,
    # resident centers^T.
    loss_bf16 = jax.block_until_ready(center_loss(x, centers, labels))
    assert jnp.allclose(loss_bf16, ref, rtol=3e-2, atol=3e-2), (loss_bf16, ref)

    print("KERNEL_OK")
</pallas_src>

<mosaic_0001>
module attributes {stable_mosaic.version = 11 : i64} {
  func.func @_center_loss_kernel(%arg0: i32, %arg1: i32, %arg2: memref<16x128xf32, #tpu.memory_space<vmem>>, %arg3: memref<128x128xf32, #tpu.memory_space<vmem>>, %arg4: memref<16x1xf32, #tpu.memory_space<vmem>>, %arg5: memref<1x128xf32, #tpu.memory_space<vmem>>, %arg6: memref<16x1xi32, #tpu.memory_space<vmem>>, %arg7: memref<8x128xf32, #tpu.memory_space<vmem>>) attributes {dimension_semantics = [#tpu.dimension_semantics<parallel>, #tpu.dimension_semantics<arbitrary>], iteration_bounds = array<i64: 2, 2>, scalar_prefetch = 0 : i64, scratch_operands = 0 : i64, tpu.core_type = #tpu.core_type<tc>, window_params = [{transform_indices = @transform_0, window_bounds = array<i64: 16, 128>}, {transform_indices = @transform_1, window_bounds = array<i64: 128, 128>}, {transform_indices = @transform_2, window_bounds = array<i64: 16, 1>}, {transform_indices = @transform_3, window_bounds = array<i64: 1, 128>}, {transform_indices = @transform_4, window_bounds = array<i64: 16, 1>}, {transform_indices = @transform_5, window_bounds = array<i64: 8, 128>}]} {
    %c0_i32 = arith.constant 0 : i32
    %0 = arith.cmpi eq, %arg1, %c0_i32 : i32
    %1 = arith.extui %0 : i1 to i32
    %c0_i32_0 = arith.constant 0 : i32
    %2 = arith.cmpi ne, %1, %c0_i32_0 : i32
    scf.if %2 {
      %cst_18 = arith.constant 0.000000e+00 : f32
      %33 = vector.broadcast %cst_18 : f32 to vector<8x128xf32>
      %c0_19 = arith.constant 0 : index
      %c0_20 = arith.constant 0 : index
      %34 = vector.load %arg7[%c0_19, %c0_20] : memref<8x128xf32, #tpu.memory_space<vmem>>, vector<8x128xf32>
      tpu.vector_store %arg7[%c0_19, %c0_20], %33 {strides = array<i32>} : memref<8x128xf32, #tpu.memory_space<vmem>>, vector<8x128xf32>,
    } else {
    }
    %c0 = arith.constant 0 : index
    %c0_1 = arith.constant 0 : index
    %3 = vector.load %arg2[%c0, %c0_1] : memref<16x128xf32, #tpu.memory_space<vmem>>, vector<16x128xf32>
    %c0_2 = arith.constant 0 : index
    %c0_3 = arith.constant 0 : index
    %4 = vector.load %arg3[%c0_2, %c0_3] : memref<128x128xf32, #tpu.memory_space<vmem>>, vector<128x128xf32>
    %cst = arith.constant dense<0.000000e+00> : vector<16x128xf32>
    %5 = tpu.matmul %3, %4, %cst {dimension_numbers = #tpu.dot_dimension_numbers<[1], [0], [0], [1], [0, 0, 1, 1], [], []>, precision = #tpu.contract_precision<fp32>} : vector<16x128xf32>, vector<128x128xf32>, vector<16x128xf32> -> vector<16x128xf32>
    %c0_4 = arith.constant 0 : index
    %c0_5 = arith.constant 0 : index
    %6 = vector.load %arg4[%c0_4, %c0_5] : memref<16x1xf32, #tpu.memory_space<vmem>>, vector<16x1xf32>
    %c0_6 = arith.constant 0 : index
    %c0_7 = arith.constant 0 : index
    %7 = vector.load %arg5[%c0_6, %c0_7] : memref<1x128xf32, #tpu.memory_space<vmem>>, vector<1x128xf32>
    %8 = vector.broadcast %6 : vector<16x1xf32> to vector<16x128xf32>
    %9 = vector.broadcast %7 : vector<1x128xf32> to vector<16x128xf32>
    %10 = arith.addf %8, %9 : vector<16x128xf32>
    %cst_8 = arith.constant 2.000000e+00 : f32
    %11 = vector.broadcast %cst_8 : f32 to vector<16x128xf32>
    %12 = arith.mulf %11, %5 : vector<16x128xf32>
    %13 = arith.subf %10, %12 : vector<16x128xf32>
    %c128_i32 = arith.constant 128 : i32
    %14 = arith.muli %arg1, %c128_i32 : i32
    %15 = tpu.iota {dimensions = array<i32: 1>} : vector<16x128xi32>
    %16 = vector.broadcast %14 : i32 to vector<16x128xi32>
    %17 = arith.addi %16, %15 : vector<16x128xi32>
    %c0_9 = arith.constant 0 : index
    %c0_10 = arith.constant 0 : index
    %18 = vector.load %arg6[%c0_9, %c0_10] : memref<16x1xi32, #tpu.memory_space<vmem>>, vector<16x1xi32>
    %19 = vector.broadcast %18 : vector<16x1xi32> to vector<16x128xi32>
    %20 = arith.cmpi eq, %19, %17 : vector<16x128xi32>
    %cst_11 = arith.constant 0.000000e+00 : f32
    %21 = vector.broadcast %cst_11 : f32 to vector<16x128xf32>
    %22 = arith.select %20, %13, %21 : vector<16x128xi1>, vector<16x128xf32>
    %cst_12 = arith.constant 9.99999996E-13 : f32
    %cst_13 = arith.constant 9.99999995E+11 : f32
    %23 = vector.broadcast %cst_12 : f32 to vector<16x128xf32>
    %24 = arith.maximumf %23, %22 : vector<16x128xf32>
    %25 = vector.broadcast %cst_13 : f32 to vector<16x128xf32>
    %26 = arith.minimumf %25, %24 : vector<16x128xf32>
    %27 = vector.extract_strided_slice %26 {offsets = [0, 0], sizes = [8, 128], strides = [1, 1]} : vector<16x128xf32> to vector<8x128xf32>
    %28 = vector.extract_strided_slice %26 {offsets = [8, 0], sizes = [8, 128], strides = [1, 1]} : vector<16x128xf32> to vector<8x128xf32>
    %29 = arith.addf %27, %28 : vector<8x128xf32>
    %c0_14 = arith.constant 0 : index
    %c0_15 = arith.constant 0 : index
    %30 = vector.load %arg7[%c0_14, %c0_15] : memref<8x128xf32, #tpu.memory_space<vmem>>, vector<8x128xf32>
    %31 = arith.addf %30, %29 : vector<8x128xf32>
    %c0_16 = arith.constant 0 : index
    %c0_17 = arith.constant 0 : index
    %32 = vector.load %arg7[%c0_16, %c0_17] : memref<8x128xf32, #tpu.memory_space<vmem>>, vector<8x128xf32>
    tpu.vector_store %arg7[%c0_16, %c0_17], %31 {strides = array<i32>} : memref<8x128xf32, #tpu.memory_space<vmem>>, vector<8x128xf32>,
    return
  }
  func.func @transform_0(%arg0: i32, %arg1: i32) -> (i32, i32) {
    %c0_i32 = arith.constant 0 : i32
    %c0_i32_0 = arith.constant 0 : i32
    return %arg0, %c0_i32 : i32, i32
  }
  func.func @transform_1(%arg0: i32, %arg1: i32) -> (i32, i32) {
    %c0_i32 = arith.constant 0 : i32
    %c0_i32_0 = arith.constant 0 : i32
    return %c0_i32, %arg1 : i32, i32
  }
  func.func @transform_2(%arg0: i32, %arg1: i32) -> (i32, i32) {
    %c0_i32 = arith.constant 0 : i32
    %c0_i32_0 = arith.constant 0 : i32
    return %arg0, %c0_i32 : i32, i32
  }
  func.func @transform_3(%arg0: i32, %arg1: i32) -> (i32, i32) {
    %c0_i32 = arith.constant 0 : i32
    %c0_i32_0 = arith.constant 0 : i32
    return %c0_i32, %arg1 : i32, i32
  }
  func.func @transform_4(%arg0: i32, %arg1: i32) -> (i32, i32) {
    %c0_i32 = arith.constant 0 : i32
    %c0_i32_0 = arith.constant 0 : i32
    return %arg0, %c0_i32 : i32, i32
  }
  func.func @transform_5(%arg0: i32, %arg1: i32) -> (i32, i32) {
    %c0_i32 = arith.constant 0 : i32
    %c0_i32_0 = arith.constant 0 : i32
    return %arg0, %c0_i32 : i32, i32
  }
}

</mosaic_0001>

<llo_original>
// kernel: tpu_custom_call.1
$region0: #{tpu_custom_call.1}
  #allocation0 [shape = 'u32[]', space=smem, size = 0x4, offset = 0x4, fixed_abs, tag = 'smem constant byte address 0x4 - core index']
  #allocation1 [shape = 'u32[72,128]{1,0:T(1,128)}', space=vmem, size = 0x9000, scoped, tag = 'internal scratch']
  %s0 = inlined_call_operand.vmem [shape: f32[32,128], index: 0, kind: input, shape index: {}]
  %s1 = inlined_call_operand.hbm [shape: f32[128,256], index: 1, kind: input, shape index: {}]
  %s2 = inlined_call_operand.vmem [shape: f32[32,1], index: 2, kind: input, shape index: {}]
  %s3 = inlined_call_operand.vmem [shape: f32[1,256], index: 3, kind: input, shape index: {}]
  %s4 = inlined_call_operand.vmem [shape: s32[32,1], index: 4, kind: input, shape index: {}]
  %s5 = inlined_call_operand.hbm [shape: f32[16,128], index: 5, kind: output, shape index: {}]
  %s6 = sld [smem:[#allocation0]]
  $region61: #{tpu_custom_call.1} parent=0
    _
  %s8 = ssub.s32 1, %s6
  %s9 = scalar_select 0, %s8, %s6
  $region1: #{tpu_custom_call.1} parent=0
    #allocation2 [shape = 'u8[131072]{0}', space=vmem, size = 0x20000, scoped, tag = 'input window, operand 1']
    #allocation3 [shape = 's32[2]{0}', space=sflag, size = 0x8, scoped, tag = 'scoped memory for tpu_custom_call.1']
    #allocation4 [shape = 's32[2]{0}', space=sflag, size = 0x8, scoped, tag = 'scoped memory for tpu_custom_call.1']
    #allocation5 [shape = 'u8[8192]{0}', space=vmem, size = 0x2000, scoped, tag = 'output window, operand 0']
    %10 = vsyncpa [#allocation3], 0
    %s11 = scalar_lea.sflag [#allocation3], 1
    %12 = vsyncpa %s11, 0
    %13 = vsyncpa [#allocation4], 0
    %s14 = scalar_lea.sflag [#allocation4], 1
    %15 = vsyncpa %s14, 0
    loop: start=0, step=1, limit=6
    $region2: #{tpu_custom_call.1} parent=1 // loop_pre_header
      _
    $region3: #{tpu_custom_call.1} parent=1 // loop_header
      %s17 = sphi 0, %s21
      %p18 = scmp.ge.s32.totalorder %s17, 6
      %s24 = sphi 0, %s36
      %s25 = sphi 0, %s32
      %s26 = sphi 0, %s24
      %s27 = sphi 0, %s25
      %s28 = sphi 0, %s26
      %s29 = sphi 0, %s27
      %s39 = sphi 0, %s41
      %s42 = sphi 0, %s39
      %s43 = sphi 0, %s42
      %s59 = sphi 0, %s43
      %s65 = sphi 0, %s67
      %s68 = sphi 0, %s65
      %s69 = sphi 0, %s68
      %s85 = sphi 0, %s69
      %s91 = sphi 0, %s93
      %s94 = sphi 0, %s91
      %s95 = sphi 0, %s94
      %s111 = sphi 0, %s95
      %s117 = sphi 0, %s119
      %s120 = sphi 0, %s117
      %s121 = sphi 0, %s120
      %s137 = sphi 0, %s121
      %s143 = sphi 0, %s145
      %s146 = sphi 0, %s143
      %s147 = sphi 0, %s146
      %s163 = sphi 0, %s147
      %s169 = sphi 0, %s171
      %s172 = sphi 0, %s169
      %s173 = sphi 0, %s172
      %s189 = sphi 0, %s173
    $region4: #{tpu_custom_call.1} parent=1 // loop_header_branch
      %20 = sbr.rel (%p18) target = $region8
    $region5: #{tpu_custom_call.1} parent=1 // loop_body
      %s22 = ssub.s32 %s17, 1
      %s23 = ssub.s32 %s17, 2
      %s30 = sadd.s32 1, %s25
      %p31 = scmp.ge.s32.totalorder %s30, 2
      %s32 = scalar_select %p31, 0, %s30
      %s33 = sadd.s32 1, %s24
      %s34 = scalar_select %p31, %s33, %s24
      %p35 = scmp.ge.s32.totalorder %s34, 2
      %s36 = scalar_select %p35, 0, %s34
      %s37 = ssub.s32 %s24, %s36
      %p38 = scmp.eq.s32.totalorder %s37, 0
      %s40 = sadd.s32 %s39, 1
      %s41 = scalar_select %p38, %s39, %s40
      %p44 = pneg %p38
      %p45 = scmp.eq.s32.totalorder %s17, 3
      %p46 = por %p44, %p45
      %p47 = scmp.ne.s32.totalorder %s39, %s42
      %p48 = scmp.eq.s32.totalorder %s17, 0
      %p49 = por %p47, %p48
      %p50 = scmp.ne.s32.totalorder %s39, %s42
      %p51 = scmp.eq.s32.totalorder %s22, 3
      %p52 = por %p50, %p51
      %p53 = scmp.ne.s32.totalorder %s42, %s43
      %p54 = scmp.eq.s32.totalorder %s22, 0
      %p55 = por %p53, %p54
      %p56 = scmp.ne.s32.totalorder %s42, %s43
      %p57 = scmp.eq.s32.totalorder %s23, 3
      %p58 = por %p56, %p57
      %p60 = scmp.ne.s32.totalorder %s43, %s59
      %p61 = scmp.eq.s32.totalorder %s23, 0
      %p62 = por %p60, %p61
      %s63 = ssub.s32 %s25, %s32
      %p64 = scmp.eq.s32.totalorder %s63, 0
      %s66 = sadd.s32 %s65, 1
      %s67 = scalar_select %p64, %s65, %s66
      %p70 = pneg %p64
      %p71 = scmp.eq.s32.totalorder %s17, 3
      %p72 = por %p70, %p71
      %p73 = scmp.ne.s32.totalorder %s65, %s68
      %p74 = scmp.eq.s32.totalorder %s17, 0
      %p75 = por %p73, %p74
      %p76 = scmp.ne.s32.totalorder %s65, %s68
      %p77 = scmp.eq.s32.totalorder %s22, 3
      %p78 = por %p76, %p77
      %p79 = scmp.ne.s32.totalorder %s68, %s69
      %p80 = scmp.eq.s32.totalorder %s22, 0
      %p81 = por %p79, %p80
      %p82 = scmp.ne.s32.totalorder %s68, %s69
      %p83 = scmp.eq.s32.totalorder %s23, 3
      %p84 = por %p82, %p83
      %p86 = scmp.ne.s32.totalorder %s69, %s85
      %p87 = scmp.eq.s32.totalorder %s23, 0
      %p88 = por %p86, %p87
      %s89 = ssub.s32 %s24, %s36
      %p90 = scmp.eq.s32.totalorder %s89, 0
      %s92 = sadd.s32 %s91, 1
      %s93 = scalar_select %p90, %s91, %s92
      %p96 = pneg %p90
      %p97 = scmp.eq.s32.totalorder %s17, 3
      %p98 = por %p96, %p97
      %p99 = scmp.ne.s32.totalorder %s91, %s94
      %p100 = scmp.eq.s32.totalorder %s17, 0
      %p101 = por %p99, %p100
      %p102 = scmp.ne.s32.totalorder %s91, %s94
      %p103 = scmp.eq.s32.totalorder %s22, 3
      %p104 = por %p102, %p103
      %p105 = scmp.ne.s32.totalorder %s94, %s95
      %p106 = scmp.eq.s32.totalorder %s22, 0
      %p107 = por %p105, %p106
      %p108 = scmp.ne.s32.totalorder %s94, %s95
      %p109 = scmp.eq.s32.totalorder %s23, 3
      %p110 = por %p108, %p109
      %p112 = scmp.ne.s32.totalorder %s95, %s111
      %p113 = scmp.eq.s32.totalorder %s23, 0
      %p114 = por %p112, %p113
      %s115 = ssub.s32 %s25, %s32
      %p116 = scmp.eq.s32.totalorder %s115, 0
      %s118 = sadd.s32 %s117, 1
      %s119 = scalar_select %p116, %s117, %s118
      %p122 = pneg %p116
      %p123 = scmp.eq.s32.totalorder %s17, 3
      %p124 = por %p122, %p123
      %p125 = scmp.ne.s32.totalorder %s117, %s120
      %p126 = scmp.eq.s32.totalorder %s17, 0
      %p127 = por %p125, %p126
      %p128 = scmp.ne.s32.totalorder %s117, %s120
      %p129 = scmp.eq.s32.totalorder %s22, 3
      %p130 = por %p128, %p129
      %p131 = scmp.ne.s32.totalorder %s120, %s121
      %p132 = scmp.eq.s32.totalorder %s22, 0
      %p133 = por %p131, %p132
      %p134 = scmp.ne.s32.totalorder %s120, %s121
      %p135 = scmp.eq.s32.totalorder %s23, 3
      %p136 = por %p134, %p135
      %p138 = scmp.ne.s32.totalorder %s121, %s137
      %p139 = scmp.eq.s32.totalorder %s23, 0
      %p140 = por %p138, %p139
      %s141 = ssub.s32 %s24, %s36
      %p142 = scmp.eq.s32.totalorder %s141, 0
      %s144 = sadd.s32 %s143, 1
      %s145 = scalar_select %p142, %s143, %s144
      %p148 = pneg %p142
      %p149 = scmp.eq.s32.totalorder %s17, 3
      %p150 = por %p148, %p149
      %p151 = scmp.ne.s32.totalorder %s143, %s146
      %p152 = scmp.eq.s32.totalorder %s17, 0
      %p153 = por %p151, %p152
      %p154 = scmp.ne.s32.totalorder %s143, %s146
      %p155 = scmp.eq.s32.totalorder %s22, 3
      %p156 = por %p154, %p155
      %p157 = scmp.ne.s32.totalorder %s146, %s147
      %p158 = scmp.eq.s32.totalorder %s22, 0
      %p159 = por %p157, %p158
      %p160 = scmp.ne.s32.totalorder %s146, %s147
      %p161 = scmp.eq.s32.totalorder %s23, 3
      %p162 = por %p160, %p161
      %p164 = scmp.ne.s32.totalorder %s147, %s163
      %p165 = scmp.eq.s32.totalorder %s23, 0
      %p166 = por %p164, %p165
      %s167 = ssub.s32 %s24, %s36
      %p168 = scmp.eq.s32.totalorder %s167, 0
      %s170 = sadd.s32 %s169, 1
      %s171 = scalar_select %p168, %s169, %s170
      %p174 = pneg %p168
      %p175 = scmp.eq.s32.totalorder %s17, 3
      %p176 = por %p174, %p175
      %p177 = scmp.ne.s32.totalorder %s169, %s172
      %p178 = scmp.eq.s32.totalorder %s17, 0
      %p179 = por %p177, %p178
      %p180 = scmp.ne.s32.totalorder %s169, %s172
      %p181 = scmp.eq.s32.totalorder %s22, 3
      %p182 = por %p180, %p181
      %p183 = scmp.ne.s32.totalorder %s172, %s173
      %p184 = scmp.eq.s32.totalorder %s22, 0
      %p185 = por %p183, %p184
      %p186 = scmp.ne.s32.totalorder %s172, %s173
      %p187 = scmp.eq.s32.totalorder %s23, 3
      %p188 = por %p186, %p187
      %p190 = scmp.ne.s32.totalorder %s173, %s189
      %p191 = scmp.eq.s32.totalorder %s23, 0
      %p192 = por %p190, %p191
      %p193 = scmp.le.s32.totalorder 1, %s17
      %p194 = scmp.lt.s32.totalorder %s17, 5
      %p195 = pnand %p193, %p194
      %p196 = pneg %p195
      // Predicated region
      $region9: #{tpu_custom_call.1} parent=5 // pred_check
        _
      $region10: #{tpu_custom_call.1} parent=5 // pred_check_branch
        %198 = sbr.rel (%p195) target = $region12
      $region11: #{tpu_custom_call.1} parent=5 // pred_region
        %s199 = ssub.s32 %s17, 1
      $region12: #{tpu_custom_call.1} parent=5 // pred_fallthru
        _
      %p200 = scmp.lt.s32.totalorder %s17, 4
      // Predicated region
      $region13: #{tpu_custom_call.1} parent=5 // pred_check
        %p201 = pneg %p200
      $region14: #{tpu_custom_call.1} parent=5 // pred_check_branch
        %203 = sbr.rel (%p201) target = $region16
      $region15: #{tpu_custom_call.1} parent=5 // pred_region
        // Predicated region
        $region17: #{tpu_custom_call.1} parent=15 // pred_check
          %p204 = pneg %p49
        $region18: #{tpu_custom_call.1} parent=15 // pred_check_branch
          %206 = sbr.rel (%p204) target = $region20
        $region19: #{tpu_custom_call.1} parent=15 // pred_region
          %s207 = smul.u32 2, %s24
          %p208 = scmp.lt.s32.totalorder %s207, 3
          %s209 = scalar_select %p208, %s207, 3
          %s210 = smul.addr %s209, 8
          %s211 = scalar_lea.vmem %s0, %s210
          %s212 = smul.u32 2, %s24
        $region20: #{tpu_custom_call.1} parent=15 // pred_fallthru
          _
        // Predicated region
        $region21: #{tpu_custom_call.1} parent=15 // pred_check
          %p213 = pneg %p75
        $region22: #{tpu_custom_call.1} parent=15 // pred_check_branch
          %215 = sbr.rel (%p213) target = $region24
        $region23: #{tpu_custom_call.1} parent=15 // pred_region
          %s216 = sand.u32 %s65, 1
          %s217 = scalar_lea.sflag [#allocation3], %s216
          %s218 = sand.u32 %s65, 1
          %s219 = smul.addr %s218, 128
          %s220 = scalar_lea.vmem [#allocation2], %s219
          %222 = vsyncadd %s217, 0
          %s223 = smul.addr %s25, 8
          %s224 = scalar_lea.hbm %s1, %s223
          %s225 = sshll.u32 %s224, 4
          %s226 = int_to_ptr.hbm [resolvable:$true] %s225
          %s227 = sshll.u32 %s220, 4
          %s228 = int_to_ptr.vmem [resolvable:$true] %s227
          %233 = dma.hbm_to_vmem [thread:$0]  %s226, 2048, %s228, %s217, 256, 128, 8
        $region24: #{tpu_custom_call.1} parent=15 // pred_fallthru
          _
        // Predicated region
        $region25: #{tpu_custom_call.1} parent=15 // pred_check
          %p234 = pneg %p101
        $region26: #{tpu_custom_call.1} parent=15 // pred_check_branch
          %236 = sbr.rel (%p234) target = $region28
        $region27: #{tpu_custom_call.1} parent=15 // pred_region
          %s237 = smul.u32 2, %s24
          %p238 = scmp.lt.s32.totalorder %s237, 3
          %s239 = scalar_select %p238, %s237, 3
          %s240 = smul.addr %s239, 8
          %s241 = scalar_lea.vmem %s2, %s240
          %s242 = smul.u32 2, %s24
        $region28: #{tpu_custom_call.1} parent=15 // pred_fallthru
          _
        // Predicated region
        $region29: #{tpu_custom_call.1} parent=15 // pred_check
          %p243 = pneg %p127
        $region30: #{tpu_custom_call.1} parent=15 // pred_check_branch
          %245 = sbr.rel (%p243) target = $region32
        $region31: #{tpu_custom_call.1} parent=15 // pred_region
          %p246 = scmp.lt.s32.totalorder %s25, 1
          %s247 = scalar_select %p246, %s25, 1
          %s248 = scalar_lea.vmem %s3, %s247
        $region32: #{tpu_custom_call.1} parent=15 // pred_fallthru
          _
        // Predicated region
        $region33: #{tpu_custom_call.1} parent=15 // pred_check
          %p249 = pneg %p153
        $region34: #{tpu_custom_call.1} parent=15 // pred_check_branch
          %251 = sbr.rel (%p249) target = $region36
        $region35: #{tpu_custom_call.1} parent=15 // pred_region
          %s252 = smul.u32 2, %s24
          %p253 = scmp.lt.s32.totalorder %s252, 3
          %s254 = scalar_select %p253, %s252, 3
          %s255 = smul.addr %s254, 8
          %s256 = scalar_lea.vmem %s4, %s255
          %s257 = smul.u32 2, %s24
        $region36: #{tpu_custom_call.1} parent=15 // pred_fallthru
          _
      $region16: #{tpu_custom_call.1} parent=5 // pred_fallthru
        _
      %p258 = scmp.le.s32.totalorder 1, %s17
      %p259 = scmp.lt.s32.totalorder %s17, 5
      %p260 = pnand %p258, %p259
      %p261 = pneg %p260
      // Predicated region
      $region37: #{tpu_custom_call.1} parent=5 // pred_check
        _
      $region38: #{tpu_custom_call.1} parent=5 // pred_check_branch
        %263 = sbr.rel (%p260) target = $region40
      $region39: #{tpu_custom_call.1} parent=5 // pred_region
        %s264 = ssub.s32 %s17, 1
        %s265 = sand.u32 %s68, 1
        %s266 = scalar_lea.sflag [#allocation3], %s265
        %s267 = sand.u32 %s68, 1
        %s268 = smul.addr %s267, 128
        %s269 = scalar_lea.vmem [#allocation2], %s268
        // Predicated region
        $region41: #{tpu_custom_call.1} parent=39 // pred_check
          %p270 = pneg %p81
        $region42: #{tpu_custom_call.1} parent=39 // pred_check_branch
          %272 = sbr.rel (%p270) target = $region44
        $region43: #{tpu_custom_call.1} parent=39 // pred_region
          %274 = dma.done %s266, 2048
        $region44: #{tpu_custom_call.1} parent=39 // pred_fallthru
          _
        %s275 = smul.u32 2, %s26
        %p276 = scmp.lt.s32.totalorder %s275, 3
        %s277 = scalar_select %p276, %s275, 3
        %s278 = smul.addr %s277, 8
        %s279 = scalar_lea.vmem %s0, %s278
        %p280 = pneg %p55
        %p281 = pneg %p52
        %s282 = sand.u32 %s68, 1
        %s283 = scalar_lea.sflag [#allocation3], %s282
        %s284 = sand.u32 %s68, 1
        %s285 = smul.addr %s284, 128
        %s286 = scalar_lea.vmem [#allocation2], %s285
        %p287 = pneg %p81
        %p288 = pneg %p78
        %s289 = smul.u32 2, %s26
        %p290 = scmp.lt.s32.totalorder %s289, 3
        %s291 = scalar_select %p290, %s289, 3
        %s292 = smul.addr %s291, 8
        %s293 = scalar_lea.vmem %s2, %s292
        %p294 = pneg %p107
        %p295 = pneg %p104
        %p296 = scmp.lt.s32.totalorder %s27, 1
        %s297 = scalar_select %p296, %s27, 1
        %s298 = scalar_lea.vmem %s3, %s297
        %p299 = pneg %p133
        %p300 = pneg %p130
        %s301 = smul.u32 2, %s26
        %p302 = scmp.lt.s32.totalorder %s301, 3
        %s303 = scalar_select %p302, %s301, 3
        %s304 = smul.addr %s303, 8
        %s305 = scalar_lea.vmem %s4, %s304
        %p306 = pneg %p159
        %p307 = pneg %p156
        %p308 = pneg %p185
        %p309 = pneg %p182
        %s310 = sand.u32 %s172, 1
        %s311 = scalar_lea.sflag [#allocation4], %s310
        %s312 = sand.u32 %s172, 1
        %s313 = smul.addr %s312, 8
        %s314 = scalar_lea.vmem [#allocation5], %s313
        %s315 = smul.u32 2, %s26
        %p316 = scmp.lt.s32.totalorder %s315, 3
        %s317 = scalar_select %p316, %s315, 3
        %s318 = smul.addr %s317, 8
        %s319 = scalar_lea.vmem %s0, %s318
        %s320 = smul.u32 2, %s26
        %s321 = smul.u32 2, %s26
        %p322 = scmp.lt.s32.totalorder %s321, 3
        %s323 = scalar_select %p322, %s321, 3
        %s324 = smul.addr %s323, 8
        %s325 = scalar_lea.vmem %s2, %s324
        %s326 = smul.u32 2, %s26
        %p327 = scmp.lt.s32.totalorder %s27, 1
        %s328 = scalar_select %p327, %s27, 1
        %s329 = scalar_lea.vmem %s3, %s328
        %s330 = smul.u32 2, %s26
        %p331 = scmp.lt.s32.totalorder %s330, 3
        %s332 = scalar_select %p331, %s330, 3
        %s333 = smul.addr %s332, 8
        %s334 = scalar_lea.vmem %s4, %s333
        %s335 = smul.u32 2, %s26
        %p336 = scmp.eq.s32.totalorder %s27, 0
        // Predicated region
        $region45: #{tpu_custom_call.1} parent=39 // pred_check
          %p337 = pneg %p336
        $region46: #{tpu_custom_call.1} parent=39 // pred_check_branch
          %339 = sbr.rel (%p337) target = $region48
        $region47: #{tpu_custom_call.1} parent=39 // pred_region
          %340 = vst [vmem:[%s314] sm:$0xff] 0.0
        $region48: #{tpu_custom_call.1} parent=39 // pred_fallthru
          _
        %v341 = vld [vmem:[%s319] sm:$0xff]
        %v342 = vld [vmem:[%s319 + $0x8] sm:$0xff]
        %v343 = vld [vmem:[%s269] sm:$0xff]
        %v344 = vld [vmem:[%s269 + $0x8] sm:$0xff]
        %v345 = vld [vmem:[%s269 + $0x10] sm:$0xff]
        %v346 = vld [vmem:[%s269 + $0x18] sm:$0xff]
        %v347 = vld [vmem:[%s269 + $0x20] sm:$0xff]
        %v348 = vld [vmem:[%s269 + $0x28] sm:$0xff]
        %v349 = vld [vmem:[%s269 + $0x30] sm:$0xff]
        %v350 = vld [vmem:[%s269 + $0x38] sm:$0xff]
        %v351 = vld [vmem:[%s269 + $0x40] sm:$0xff]
        %v352 = vld [vmem:[%s269 + $0x48] sm:$0xff]
        %v353 = vld [vmem:[%s269 + $0x50] sm:$0xff]
        %v354 = vld [vmem:[%s269 + $0x58] sm:$0xff]
        %v355 = vld [vmem:[%s269 + $0x60] sm:$0xff]
        %v356 = vld [vmem:[%s269 + $0x68] sm:$0xff]
        %v357 = vld [vmem:[%s269 + $0x70] sm:$0xff]
        %v358 = vld [vmem:[%s269 + $0x78] sm:$0xff]
        %v359 = vand.u32 %v358, 4294901760
        %360 = vmatpush.msra.mxu0 %v359
        %v361 = vand.u32 %v357, 4294901760
        %362 = vmatpush.msra.mxu0 %v361
        %v363 = vand.u32 %v356, 4294901760
        %364 = vmatpush.msra.mxu0 %v363
        %v365 = vand.u32 %v355, 4294901760
        %366 = vmatpush.msra.mxu0 %v365
        %v367 = vand.u32 %v354, 4294901760
        %368 = vmatpush.msra.mxu0 %v367
        %v369 = vand.u32 %v353, 4294901760
        %370 = vmatpush.msra.mxu0 %v369
        %v371 = vand.u32 %v352, 4294901760
        %372 = vmatpush.msra.mxu0 %v371
        %v373 = vand.u32 %v351, 4294901760
        %374 = vmatpush.msra.mxu0 %v373
        %v375 = vand.u32 %v350, 4294901760
        %376 = vmatpush.msra.mxu0 %v375
        %v377 = vand.u32 %v349, 4294901760
        %378 = vmatpush.msra.mxu0 %v377
        %v379 = vand.u32 %v348, 4294901760
        %380 = vmatpush.msra.mxu0 %v379
        %v381 = vand.u32 %v347, 4294901760
        %382 = vmatpush.msra.mxu0 %v381
        %v383 = vand.u32 %v346, 4294901760
        %384 = vmatpush.msra.mxu0 %v383
        %v385 = vand.u32 %v345, 4294901760
        %386 = vmatpush.msra.mxu0 %v385
        %v387 = vand.u32 %v344, 4294901760
        %388 = vmatpush.msra.mxu0 %v387
        %v389 = vand.u32 %v343, 4294901760
        %390 = vmatpush.msra.mxu0 %v389
        %v391 = vand.u32 %v341, 4294901760
        %v392 = vsub.f32 %v341, %v391
        %v393 = vand.u32 %v392, 4294901760
        %v394 = vsub.f32 %v392, %v393
        %v395 = vand.u32 %v394, 4294901760
        %396 = vmatmul.f32.gmra.mxu0 %v395
        %v397 = vpop.f32.mrf.mxu0
        %v398 = vadd.f32 0.0, %v397
        %v399 = vand.u32 %v342, 4294901760
        %v400 = vsub.f32 %v342, %v399
        %v401 = vand.u32 %v400, 4294901760
        %v402 = vsub.f32 %v400, %v401
        %v403 = vand.u32 %v402, 4294901760
        %404 = vmatmul.f32.gmra.mxu0 %v403
        %v405 = vpop.f32.mrf.mxu0
        %v406 = vadd.f32 0.0, %v405
        %407 = vdwg.mxu0
        %v408 = vand.u32 %v358, 4294901760
        %v409 = vsub.f32 %v358, %v408
        %v410 = vand.u32 %v409, 4294901760
        %v411 = vsub.f32 %v409, %v410
        %v412 = vand.u32 %v411, 4294901760
        %413 = vmatpush.msra.mxu0 %v412
        %v414 = vand.u32 %v357, 4294901760
        %v415 = vsub.f32 %v357, %v414
        %v416 = vand.u32 %v415, 4294901760
        %v417 = vsub.f32 %v415, %v416
        %v418 = vand.u32 %v417, 4294901760
        %419 = vmatpush.msra.mxu0 %v418
        %v420 = vand.u32 %v356, 4294901760
        %v421 = vsub.f32 %v356, %v420
        %v422 = vand.u32 %v421, 4294901760
        %v423 = vsub.f32 %v421, %v422
        %v424 = vand.u32 %v423, 4294901760
        %425 = vmatpush.msra.mxu0 %v424
        %v426 = vand.u32 %v355, 4294901760
        %v427 = vsub.f32 %v355, %v426
        %v428 = vand.u32 %v427, 4294901760
        %v429 = vsub.f32 %v427, %v428
        %v430 = vand.u32 %v429, 4294901760
        %431 = vmatpush.msra.mxu0 %v430
        %v432 = vand.u32 %v354, 4294901760
        %v433 = vsub.f32 %v354, %v432
        %v434 = vand.u32 %v433, 4294901760
        %v435 = vsub.f32 %v433, %v434
        %v436 = vand.u32 %v435, 4294901760
        %437 = vmatpush.msra.mxu0 %v436
        %v438 = vand.u32 %v353, 4294901760
        %v439 = vsub.f32 %v353, %v438
        %v440 = vand.u32 %v439, 4294901760
        %v441 = vsub.f32 %v439, %v440
        %v442 = vand.u32 %v441, 4294901760
        %443 = vmatpush.msra.mxu0 %v442
        %v444 = vand.u32 %v352, 4294901760
        %v445 = vsub.f32 %v352, %v444
        %v446 = vand.u32 %v445, 4294901760
        %v447 = vsub.f32 %v445, %v446
        %v448 = vand.u32 %v447, 4294901760
        %449 = vmatpush.msra.mxu0 %v448
        %v450 = vand.u32 %v351, 4294901760
        %v451 = vsub.f32 %v351, %v450
        %v452 = vand.u32 %v451, 4294901760
        %v453 = vsub.f32 %v451, %v452
        %v454 = vand.u32 %v453, 4294901760
        %455 = vmatpush.msra.mxu0 %v454
        %v456 = vand.u32 %v350, 4294901760
        %v457 = vsub.f32 %v350, %v456
        %v458 = vand.u32 %v457, 4294901760
        %v459 = vsub.f32 %v457, %v458
        %v460 = vand.u32 %v459, 4294901760
        %461 = vmatpush.msra.mxu0 %v460
        %v462 = vand.u32 %v349, 4294901760
        %v463 = vsub.f32 %v349, %v462
        %v464 = vand.u32 %v463, 4294901760
        %v465 = vsub.f32 %v463, %v464
        %v466 = vand.u32 %v465, 4294901760
        %467 = vmatpush.msra.mxu0 %v466
        %v468 = vand.u32 %v348, 4294901760
        %v469 = vsub.f32 %v348, %v468
        %v470 = vand.u32 %v469, 4294901760
        %v471 = vsub.f32 %v469, %v470
        %v472 = vand.u32 %v471, 4294901760
        %473 = vmatpush.msra.mxu0 %v472
        %v474 = vand.u32 %v347, 4294901760
        %v475 = vsub.f32 %v347, %v474
        %v476 = vand.u32 %v475, 4294901760
        %v477 = vsub.f32 %v475, %v476
        %v478 = vand.u32 %v477, 4294901760
        %479 = vmatpush.msra.mxu0 %v478
        %v480 = vand.u32 %v346, 4294901760
        %v481 = vsub.f32 %v346, %v480
        %v482 = vand.u32 %v481, 4294901760
        %v483 = vsub.f32 %v481, %v482
        %v484 = vand.u32 %v483, 4294901760
        %485 = vmatpush.msra.mxu0 %v484
        %v486 = vand.u32 %v345, 4294901760
        %v487 = vsub.f32 %v345, %v486
        %v488 = vand.u32 %v487, 4294901760
        %v489 = vsub.f32 %v487, %v488
        %v490 = vand.u32 %v489, 4294901760
        %491 = vmatpush.msra.mxu0 %v490
        %v492 = vand.u32 %v344, 4294901760
        %v493 = vsub.f32 %v344, %v492
        %v494 = vand.u32 %v493, 4294901760
        %v495 = vsub.f32 %v493, %v494
        %v496 = vand.u32 %v495, 4294901760
        %497 = vmatpush.msra.mxu0 %v496
        %v498 = vand.u32 %v343, 4294901760
        %v499 = vsub.f32 %v343, %v498
        %v500 = vand.u32 %v499, 4294901760
        %v501 = vsub.f32 %v499, %v500
        %v502 = vand.u32 %v501, 4294901760
        %503 = vmatpush.msra.mxu0 %v502
        %v504 = vand.u32 %v341, 4294901760
        %505 = vmatmul.f32.gmra.mxu0 %v504
        %v506 = vpop.f32.mrf.mxu0
        %v507 = vadd.f32 %v398, %v506
        %v508 = vand.u32 %v342, 4294901760
        %509 = vmatmul.f32.gmra.mxu0 %v508
        %v510 = vpop.f32.mrf.mxu0
        %v511 = vadd.f32 %v406, %v510
        %512 = vdwg.mxu0
        %v513 = vand.u32 %v358, 4294901760
        %v514 = vsub.f32 %v358, %v513
        %515 = vmatpush.msra.mxu0 %v514
        %v516 = vand.u32 %v357, 4294901760
        %v517 = vsub.f32 %v357, %v516
        %518 = vmatpush.msra.mxu0 %v517
        %v519 = vand.u32 %v356, 4294901760
        %v520 = vsub.f32 %v356, %v519
        %521 = vmatpush.msra.mxu0 %v520
        %v522 = vand.u32 %v355, 4294901760
        %v523 = vsub.f32 %v355, %v522
        %524 = vmatpush.msra.mxu0 %v523
        %v525 = vand.u32 %v354, 4294901760
        %v526 = vsub.f32 %v354, %v525
        %527 = vmatpush.msra.mxu0 %v526
        %v528 = vand.u32 %v353, 4294901760
        %v529 = vsub.f32 %v353, %v528
        %530 = vmatpush.msra.mxu0 %v529
        %v531 = vand.u32 %v352, 4294901760
        %v532 = vsub.f32 %v352, %v531
        %533 = vmatpush.msra.mxu0 %v532
        %v534 = vand.u32 %v351, 4294901760
        %v535 = vsub.f32 %v351, %v534
        %536 = vmatpush.msra.mxu0 %v535
        %v537 = vand.u32 %v350, 4294901760
        %v538 = vsub.f32 %v350, %v537
        %539 = vmatpush.msra.mxu0 %v538
        %v540 = vand.u32 %v349, 4294901760
        %v541 = vsub.f32 %v349, %v540
        %542 = vmatpush.msra.mxu0 %v541
        %v543 = vand.u32 %v348, 4294901760
        %v544 = vsub.f32 %v348, %v543
        %545 = vmatpush.msra.mxu0 %v544
        %v546 = vand.u32 %v347, 4294901760
        %v547 = vsub.f32 %v347, %v546
        %548 = vmatpush.msra.mxu0 %v547
        %v549 = vand.u32 %v346, 4294901760
        %v550 = vsub.f32 %v346, %v549
        %551 = vmatpush.msra.mxu0 %v550
        %v552 = vand.u32 %v345, 4294901760
        %v553 = vsub.f32 %v345, %v552
        %554 = vmatpush.msra.mxu0 %v553
        %v555 = vand.u32 %v344, 4294901760
        %v556 = vsub.f32 %v344, %v555
        %557 = vmatpush.msra.mxu0 %v556
        %v558 = vand.u32 %v343, 4294901760
        %v559 = vsub.f32 %v343, %v558
        %560 = vmatpush.msra.mxu0 %v559
        %v561 = vand.u32 %v341, 4294901760
        %v562 = vsub.f32 %v341, %v561
        %563 = vmatmul.f32.gmra.mxu0 %v562
        %v564 = vpop.f32.mrf.mxu0
        %v565 = vadd.f32 %v507, %v564
        %v566 = vand.u32 %v342, 4294901760
        %v567 = vsub.f32 %v342, %v566
        %568 = vmatmul.f32.gmra.mxu0 %v567
        %v569 = vpop.f32.mrf.mxu0
        %v570 = vadd.f32 %v511, %v569
        %571 = vdwg.mxu0
        %v572 = vand.u32 %v358, 4294901760
        %573 = vmatpush.msra.mxu0 %v572
        %v574 = vand.u32 %v357, 4294901760
        %575 = vmatpush.msra.mxu0 %v574
        %v576 = vand.u32 %v356, 4294901760
        %577 = vmatpush.msra.mxu0 %v576
        %v578 = vand.u32 %v355, 4294901760
        %579 = vmatpush.msra.mxu0 %v578
        %v580 = vand.u32 %v354, 4294901760
        %581 = vmatpush.msra.mxu0 %v580
        %v582 = vand.u32 %v353, 4294901760
        %583 = vmatpush.msra.mxu0 %v582
        %v584 = vand.u32 %v352, 4294901760
        %585 = vmatpush.msra.mxu0 %v584
        %v586 = vand.u32 %v351, 4294901760
        %587 = vmatpush.msra.mxu0 %v586
        %v588 = vand.u32 %v350, 4294901760
        %589 = vmatpush.msra.mxu0 %v588
        %v590 = vand.u32 %v349, 4294901760
        %591 = vmatpush.msra.mxu0 %v590
        %v592 = vand.u32 %v348, 4294901760
        %593 = vmatpush.msra.mxu0 %v592
        %v594 = vand.u32 %v347, 4294901760
        %595 = vmatpush.msra.mxu0 %v594
        %v596 = vand.u32 %v346, 4294901760
        %597 = vmatpush.msra.mxu0 %v596
        %v598 = vand.u32 %v345, 4294901760
        %599 = vmatpush.msra.mxu0 %v598
        %v600 = vand.u32 %v344, 4294901760
        %601 = vmatpush.msra.mxu0 %v600
        %v602 = vand.u32 %v343, 4294901760
        %603 = vmatpush.msra.mxu0 %v602
        %v604 = vand.u32 %v341, 4294901760
        %v605 = vsub.f32 %v341, %v604
        %v606 = vand.u32 %v605, 4294901760
        %607 = vmatmul.f32.gmra.mxu0 %v606
        %v608 = vpop.f32.mrf.mxu0
        %v609 = vadd.f32 %v565, %v608
        %v610 = vand.u32 %v342, 4294901760
        %v611 = vsub.f32 %v342, %v610
        %v612 = vand.u32 %v611, 4294901760
        %613 = vmatmul.f32.gmra.mxu0 %v612
        %v614 = vpop.f32.mrf.mxu0
        %v615 = vadd.f32 %v570, %v614
        %616 = vdwg.mxu0
        %v617 = vand.u32 %v358, 4294901760
        %v618 = vsub.f32 %v358, %v617
        %v619 = vand.u32 %v618, 4294901760
        %620 = vmatpush.msra.mxu0 %v619
        %v621 = vand.u32 %v357, 4294901760
        %v622 = vsub.f32 %v357, %v621
        %v623 = vand.u32 %v622, 4294901760
        %624 = vmatpush.msra.mxu0 %v623
        %v625 = vand.u32 %v356, 4294901760
        %v626 = vsub.f32 %v356, %v625
        %v627 = vand.u32 %v626, 4294901760
        %628 = vmatpush.msra.mxu0 %v627
        %v629 = vand.u32 %v355, 4294901760
        %v630 = vsub.f32 %v355, %v629
        %v631 = vand.u32 %v630, 4294901760
        %632 = vmatpush.msra.mxu0 %v631
        %v633 = vand.u32 %v354, 4294901760
        %v634 = vsub.f32 %v354, %v633
        %v635 = vand.u32 %v634, 4294901760
        %636 = vmatpush.msra.mxu0 %v635
        %v637 = vand.u32 %v353, 4294901760
        %v638 = vsub.f32 %v353, %v637
        %v639 = vand.u32 %v638, 4294901760
        %640 = vmatpush.msra.mxu0 %v639
        %v641 = vand.u32 %v352, 4294901760
        %v642 = vsub.f32 %v352, %v641
        %v643 = vand.u32 %v642, 4294901760
        %644 = vmatpush.msra.mxu0 %v643
        %v645 = vand.u32 %v351, 4294901760
        %v646 = vsub.f32 %v351, %v645
        %v647 = vand.u32 %v646, 4294901760
        %648 = vmatpush.msra.mxu0 %v647
        %v649 = vand.u32 %v350, 4294901760
        %v650 = vsub.f32 %v350, %v649
        %v651 = vand.u32 %v650, 4294901760
        %652 = vmatpush.msra.mxu0 %v651
        %v653 = vand.u32 %v349, 4294901760
        %v654 = vsub.f32 %v349, %v653
        %v655 = vand.u32 %v654, 4294901760
        %656 = vmatpush.msra.mxu0 %v655
        %v657 = vand.u32 %v348, 4294901760
        %v658 = vsub.f32 %v348, %v657
        %v659 = vand.u32 %v658, 4294901760
        %660 = vmatpush.msra.mxu0 %v659
        %v661 = vand.u32 %v347, 4294901760
        %v662 = vsub.f32 %v347, %v661
        %v663 = vand.u32 %v662, 4294901760
        %664 = vmatpush.msra.mxu0 %v663
        %v665 = vand.u32 %v346, 4294901760
        %v666 = vsub.f32 %v346, %v665
        %v667 = vand.u32 %v666, 4294901760
        %668 = vmatpush.msra.mxu0 %v667
        %v669 = vand.u32 %v345, 4294901760
        %v670 = vsub.f32 %v345, %v669
        %v671 = vand.u32 %v670, 4294901760
        %672 = vmatpush.msra.mxu0 %v671
        %v673 = vand.u32 %v344, 4294901760
        %v674 = vsub.f32 %v344, %v673
        %v675 = vand.u32 %v674, 4294901760
        %676 = vmatpush.msra.mxu0 %v675
        %v677 = vand.u32 %v343, 4294901760
        %v678 = vsub.f32 %v343, %v677
        %v679 = vand.u32 %v678, 4294901760
        %680 = vmatpush.msra.mxu0 %v679
        %v681 = vand.u32 %v341, 4294901760
        %682 = vmatmul.f32.gmra.mxu0 %v681
        %v683 = vpop.f32.mrf.mxu0
        %v684 = vadd.f32 %v609, %v683
        %v685 = vand.u32 %v342, 4294901760
        %686 = vmatmul.f32.gmra.mxu0 %v685
        %v687 = vpop.f32.mrf.mxu0
        %v688 = vadd.f32 %v615, %v687
        %689 = vdwg.mxu0
        %v690 = vand.u32 %v358, 4294901760
        %691 = vmatpush.msra.mxu0 %v690
        %v692 = vand.u32 %v357, 4294901760
        %693 = vmatpush.msra.mxu0 %v692
        %v694 = vand.u32 %v356, 4294901760
        %695 = vmatpush.msra.mxu0 %v694
        %v696 = vand.u32 %v355, 4294901760
        %697 = vmatpush.msra.mxu0 %v696
        %v698 = vand.u32 %v354, 4294901760
        %699 = vmatpush.msra.mxu0 %v698
        %v700 = vand.u32 %v353, 4294901760
        %701 = vmatpush.msra.mxu0 %v700
        %v702 = vand.u32 %v352, 4294901760
        %703 = vmatpush.msra.mxu0 %v702
        %v704 = vand.u32 %v351, 4294901760
        %705 = vmatpush.msra.mxu0 %v704
        %v706 = vand.u32 %v350, 4294901760
        %707 = vmatpush.msra.mxu0 %v706
        %v708 = vand.u32 %v349, 4294901760
        %709 = vmatpush.msra.mxu0 %v708
        %v710 = vand.u32 %v348, 4294901760
        %711 = vmatpush.msra.mxu0 %v710
        %v712 = vand.u32 %v347, 4294901760
        %713 = vmatpush.msra.mxu0 %v712
        %v714 = vand.u32 %v346, 4294901760
        %715 = vmatpush.msra.mxu0 %v714
        %v716 = vand.u32 %v345, 4294901760
        %717 = vmatpush.msra.mxu0 %v716
        %v718 = vand.u32 %v344, 4294901760
        %719 = vmatpush.msra.mxu0 %v718
        %v720 = vand.u32 %v343, 4294901760
        %721 = vmatpush.msra.mxu0 %v720
        %v722 = vand.u32 %v341, 4294901760
        %723 = vmatmul.f32.gmra.mxu0 %v722
        %v724 = vpop.f32.mrf.mxu0
        %v725 = vadd.f32 %v684, %v724
        %v726 = vand.u32 %v342, 4294901760
        %727 = vmatmul.f32.gmra.mxu0 %v726
        %v728 = vpop.f32.mrf.mxu0
        %v729 = vadd.f32 %v688, %v728
        %730 = vdwg.mxu0
        %v731 = vld [vmem:[%s325] sm:$0xff]
        %v732 = vld [vmem:[%s325 + $0x8] sm:$0xff]
        %v733 = vld [vmem:[%s329] sm:$0x1]
        %735 = vset.pattern.permute.xlu0 0
        %736 = vperm.xlu0 %735, %v731
        %v737 = vpop.permute.xlu0 %736
        %740 = vset.pattern.permute.xlu0 0
        %741 = vperm.xlu0 %740, %v732
        %v742 = vpop.permute.xlu0 %741
        %v745 = vperm.slane %v733, 0
        %v747 = vadd.f32 %v737, %v745
        %v748 = vadd.f32 %v742, %v745
        %v749 = vmul.f32 %v725, 2.0
        %v750 = vmul.f32 %v729, 2.0
        %v751 = vsub.f32 %v747, %v749
        %v752 = vsub.f32 %v748, %v750
        %s753 = smul.u32 %s27, 128
        %v754 = vlaneseq
        %v755 = vand.u32 %v754, 127
        %v756 = vstv %s753
        %v757 = vadd.s32 %v756, %v755
        %v758 = vld [vmem:[%s334] sm:$0xff]
        %v759 = vld [vmem:[%s334 + $0x8] sm:$0xff]
        %760 = vset.pattern.permute.xlu0 0
        %761 = vperm.xlu0 %760, %v758
        %v762 = vpop.permute.xlu0 %761
        %763 = vset.pattern.permute.xlu0 0
        %764 = vperm.xlu0 %763, %v759
        %v765 = vpop.permute.xlu0 %764
        %vm766 = vcmp.eq.s32.totalorder %v762, %v757
        %vm767 = vcmp.eq.s32.totalorder %v765, %v757
        %v768 = vsel %vm766, %v751, 0.0
        %v769 = vsel %vm767, %v752, 0.0
        %v770 = vmax.f32 %v768, 1e-12
        %v771 = vmax.f32 %v769, 1e-12
        %v772 = vmin.f32 %v770, 1e+12
        %v773 = vmin.f32 %v771, 1e+12
        %v774 = vadd.f32 %v772, %v773
        %v775 = vld [vmem:[%s314] sm:$0xff]
        %v776 = vadd.f32 %v775, %v774
        %777 = vst [vmem:[%s314] sm:$0xff] %v776
        %s778 = sand.u32 %s172, 1
        %s779 = scalar_lea.sflag [#allocation4], %s778
        %s780 = sand.u32 %s172, 1
        %s781 = smul.addr %s780, 8
        %s782 = scalar_lea.vmem [#allocation5], %s781
        // Predicated region
        $region49: #{tpu_custom_call.1} parent=39 // pred_check
          %p783 = pneg %p182
        $region50: #{tpu_custom_call.1} parent=39 // pred_check_branch
          %785 = sbr.rel (%p783) target = $region52
        $region51: #{tpu_custom_call.1} parent=39 // pred_region
          %787 = vsyncadd %s779, 0
          %s788 = smul.addr %s26, 8
          %s789 = scalar_lea.hbm %s5, %s788
          %s791 = sshll.u32 %s782, 4
          %s792 = int_to_ptr.vmem [resolvable:$true] %s791
          %s793 = sshll.u32 %s789, 4
          %s794 = int_to_ptr.hbm [resolvable:$true] %s793
          %796 = dma.vmem_to_hbm [thread:$0]  %s792, 128, %s794, %s779
        $region52: #{tpu_custom_call.1} parent=39 // pred_fallthru
          _
      $region40: #{tpu_custom_call.1} parent=5 // pred_fallthru
        _
      %p797 = scmp.le.s32.totalorder 2, %s17
      // Predicated region
      $region53: #{tpu_custom_call.1} parent=5 // pred_check
        %p798 = pneg %p797
      $region54: #{tpu_custom_call.1} parent=5 // pred_check_branch
        %800 = sbr.rel (%p798) target = $region56
      $region55: #{tpu_custom_call.1} parent=5 // pred_region
        %s801 = ssub.s32 %s17, 2
        // Predicated region
        $region57: #{tpu_custom_call.1} parent=55 // pred_check
          %p802 = pneg %p188
        $region58: #{tpu_custom_call.1} parent=55 // pred_check_branch
          %804 = sbr.rel (%p802) target = $region60
        $region59: #{tpu_custom_call.1} parent=55 // pred_region
          %s805 = sand.u32 %s173, 1
          %s806 = scalar_lea.sflag [#allocation4], %s805
          %s807 = sand.u32 %s173, 1
          %s808 = smul.addr %s807, 8
          %s809 = scalar_lea.vmem [#allocation5], %s808
          %811 = dma.done %s806, 128
        $region60: #{tpu_custom_call.1} parent=55 // pred_fallthru
          _
      $region56: #{tpu_custom_call.1} parent=5 // pred_fallthru
        _
    $region6: #{tpu_custom_call.1} parent=1 // loop_footer
      %s21 = sadd.s32 1, %s17
    $region7: #{tpu_custom_call.1} parent=1 // loop_footer_branch
      %16 = sbr.rel target = $region3
    $region8: #{tpu_custom_call.1} parent=1 // loop_exit
      _
    %812 = vsyncpa [#allocation3], 1
    %s813 = scalar_lea.sflag [#allocation3], 1
    %814 = vsyncpa %s813, 1
    %815 = vsyncpa [#allocation4], 1
    %s816 = scalar_lea.sflag [#allocation4], 1
    %817 = vsyncpa %s816, 1

</llo_original>
